<compile_context>
chip_gen: v7x
topology: tpu7x:2x2x1
jax: 0.10.0
libtpu: 0.0.40
codegen_flags: <defaults>
</compile_context>

<pallas_src>
import jax
import jax.numpy as jnp
from jax.experimental import pallas as pl
from jax.experimental.pallas import tpu as pltpu


def _gelu_kernel(x_ref, o_ref):
    # Compute in f32, store in the output dtype.
    x = x_ref[...].astype(jnp.float32)
    tanh_arg = 0.7978845608028654 * (x + 0.044715 * (x * x * x))
    o_ref[...] = (0.5 * x * (1.0 + jnp.tanh(tanh_arg))).astype(o_ref.dtype)


_LANES = 128
_COL_CANDIDATES = (2048, 1024, 512, 256, 128)   # lane-dense slab widths
_TARGET_BLOCK_BYTES = 4 * 1024 * 1024           # ~4 MiB per buffer


def _run_gelu_2d(x2d: jax.Array) -> jax.Array:
    rows, cols = x2d.shape
    itemsize = jnp.dtype(x2d.dtype).itemsize

    # Pick block_rows so one buffer is ~4 MiB; must be a multiple of 8 unless
    # it spans the full sublane extent (then any value is legal).
    br = max(1, _TARGET_BLOCK_BYTES // (cols * itemsize))
    if br >= rows:
        block_rows = rows                       # full extent -> always legal
    else:
        block_rows = max(8, (br // 8) * 8)      # multiple of 8

    grid = (pl.cdiv(rows, block_rows),)         # ragged tail write-masked

    n_elems = rows * cols
    cost = pl.CostEstimate(
        flops=8 * n_elems,
        transcendentals=n_elems,
        bytes_accessed=2 * n_elems * itemsize,
    )

    return pl.pallas_call(
        _gelu_kernel,
        out_shape=jax.ShapeDtypeStruct((rows, cols), x2d.dtype),
        grid_spec=pltpu.PrefetchScalarGridSpec(
            num_scalar_prefetch=0,
            grid=grid,
            in_specs=[pl.BlockSpec((block_rows, cols), lambda i: (i, 0))],
            out_specs=pl.BlockSpec((block_rows, cols), lambda i: (i, 0)),
        ),
        compiler_params=pltpu.CompilerParams(
            dimension_semantics=("parallel",),
            vmem_limit_bytes=48 * 1024 * 1024,  # safe under v7x 64 MiB physical
        ),
        cost_estimate=cost,
    )(x2d)


def gelu_pallas(x: jax.Array) -> jax.Array:
    """Elementwise tanh-GELU via a Pallas TPU kernel. Works on any shape."""
    orig_shape = x.shape
    n = x.size

    if n == 0:
        return x

    if n % _LANES == 0:
        # Fast path: no padding, no extra HBM round-trips. Flat contiguous
        # reshape to the widest lane-dense slab that divides the element count.
        cols = next(c for c in _COL_CANDIDATES if n % c == 0)
        rows = n // cols
        out2d = _run_gelu_2d(x.reshape(rows, cols))
        return out2d.reshape(orig_shape)

    # Slow path (element count not a multiple of 128): pad the flat view to a
    # whole number of (8, 128) tiles, run, slice back. Extra HBM traffic, but
    # only hit for oddly sized inputs.
    tile_elems = 8 * _LANES
    n_pad = ((n + tile_elems - 1) // tile_elems) * tile_elems
    xf = jnp.pad(x.reshape(-1), (0, n_pad - n))
    out2d = _run_gelu_2d(xf.reshape(n_pad // _LANES, _LANES))
    return out2d.reshape(-1)[:n].reshape(orig_shape)


class ModelNew:
    """Mirror of the PyTorch ModelNew: forward(x) = tanh-approx GELU(x)."""

    def __init__(self):
        pass

    def forward(self, x):
        return gelu_pallas(x)

    def __call__(self, x):
        return self.forward(x)


def _gelu_ref(x):
    x = x.astype(jnp.float32)
    return 0.5 * x * (1.0 + jnp.tanh(0.7978845608028654 * (x + 0.044715 * x ** 3)))


if __name__ == "__main__":
    key = jax.random.PRNGKey(0)
    x = jax.random.normal(key, (2, 4, 16, 16), dtype=jnp.float32)

    model = ModelNew()
    y = jax.block_until_ready(model(x))

    y_ref = _gelu_ref(x)
    assert y.shape == x.shape and y.dtype == x.dtype
    assert jnp.allclose(y, y_ref, atol=1e-5, rtol=1e-5), "mismatch vs reference"

    # Also exercise a non-tile-aligned shape to cover the padded path.
    x2 = jax.random.normal(jax.random.PRNGKey(1), (3, 5, 7, 11), dtype=jnp.float32)
    y2 = jax.block_until_ready(model(x2))
    assert jnp.allclose(y2, _gelu_ref(x2), atol=1e-5, rtol=1e-5), "mismatch (ragged)"

    print("KERNEL_OK")
</pallas_src>

<mosaic_0001>
module attributes {stable_mosaic.version = 11 : i64} {
  func.func @_gelu_kernel(%arg0: i32, %arg1: memref<1x2048xf32, #tpu.memory_space<vmem>>, %arg2: memref<1x2048xf32, #tpu.memory_space<vmem>>) attributes {dimension_semantics = [#tpu.dimension_semantics<parallel>], iteration_bounds = array<i64: 1>, scalar_prefetch = 0 : i64, scratch_operands = 0 : i64, tpu.core_type = #tpu.core_type<tc>, window_params = [{transform_indices = @transform_0, window_bounds = array<i64: 1, 2048>}, {transform_indices = @transform_1, window_bounds = array<i64: 1, 2048>}]} {
    %c0 = arith.constant 0 : index
    %c0_0 = arith.constant 0 : index
    %0 = vector.load %arg1[%c0, %c0_0] : memref<1x2048xf32, #tpu.memory_space<vmem>>, vector<1x2048xf32>
    %1 = arith.mulf %0, %0 : vector<1x2048xf32>
    %2 = arith.mulf %1, %0 : vector<1x2048xf32>
    %cst = arith.constant 4.471500e-02 : f32
    %3 = vector.broadcast %cst : f32 to vector<1x2048xf32>
    %4 = arith.mulf %3, %2 : vector<1x2048xf32>
    %5 = arith.addf %0, %4 : vector<1x2048xf32>
    %cst_1 = arith.constant 0.797884583 : f32
    %6 = vector.broadcast %cst_1 : f32 to vector<1x2048xf32>
    %7 = arith.mulf %6, %5 : vector<1x2048xf32>
    %cst_2 = arith.constant 5.000000e-01 : f32
    %8 = vector.broadcast %cst_2 : f32 to vector<1x2048xf32>
    %9 = arith.mulf %8, %0 : vector<1x2048xf32>
    %10 = math.tanh %7 : vector<1x2048xf32>
    %cst_3 = arith.constant 1.000000e+00 : f32
    %11 = vector.broadcast %cst_3 : f32 to vector<1x2048xf32>
    %12 = arith.addf %11, %10 : vector<1x2048xf32>
    %13 = arith.mulf %9, %12 : vector<1x2048xf32>
    %c0_4 = arith.constant 0 : index
    %c0_5 = arith.constant 0 : index
    %14 = vector.load %arg2[%c0_4, %c0_5] : memref<1x2048xf32, #tpu.memory_space<vmem>>, vector<1x2048xf32>
    tpu.vector_store %arg2[%c0_4, %c0_5], %13 {strides = array<i32>} : memref<1x2048xf32, #tpu.memory_space<vmem>>, vector<1x2048xf32>,
    return
  }
  func.func @transform_0(%arg0: i32) -> (i32, i32) {
    %c0_i32 = arith.constant 0 : i32
    %c0_i32_0 = arith.constant 0 : i32
    return %arg0, %c0_i32 : i32, i32
  }
  func.func @transform_1(%arg0: i32) -> (i32, i32) {
    %c0_i32 = arith.constant 0 : i32
    %c0_i32_0 = arith.constant 0 : i32
    return %arg0, %c0_i32 : i32, i32
  }
}

</mosaic_0001>

<llo_original>
// kernel: tpu_custom_call.1
$region0: #{tpu_custom_call.1}
  #allocation0 [shape = 'u32[]', space=smem, size = 0x4, offset = 0x4, fixed_abs, tag = 'smem constant byte address 0x4 - core index']
  #allocation1 [shape = 'u32[144,128]{1,0:T(1,128)}', space=vmem, size = 0x12000, scoped, tag = 'internal scratch']
  %s0 = inlined_call_operand.hbm [shape: f32[1,2048], index: 0, kind: input, shape index: {}]
  %s1 = inlined_call_operand.hbm [shape: f32[1,2048], index: 1, kind: output, shape index: {}]
  %s2 = sld [smem:[#allocation0]]
  $region18: #{tpu_custom_call.1} parent=0
    _
  %s4 = ssub.s32 1, %s2
  %s5 = scalar_select 0, %s4, %s2
  $region1: #{tpu_custom_call.1} parent=0
    #allocation2 [shape = 'u8[8192]{0}', space=vmem, size = 0x2000, scoped, tag = 'input window, operand 0, single buffered']
    #allocation3 [shape = 's32[1]{0}', space=sflag, size = 0x4, scoped, tag = 'scoped memory for tpu_custom_call.1']
    #allocation4 [shape = 's32[1]{0}', space=sflag, size = 0x4, scoped, tag = 'scoped memory for tpu_custom_call.1']
    #allocation5 [shape = 'u8[8192]{0}', space=vmem, size = 0x2000, scoped, tag = 'output window, operand 0, single buffered']
    %6 = vsyncpa [#allocation3], 0
    %7 = vsyncpa [#allocation4], 0
    // Predicated region
    $region2: #{tpu_custom_call.1} parent=1 // pred_check
      _
    $region3: #{tpu_custom_call.1} parent=1 // pred_check_branch
      %9 = sbr.rel (0) target = $region5
    $region4: #{tpu_custom_call.1} parent=1 // pred_region
      %s11 = ssub.s32 256, 256
      %12 = vsyncadd [#allocation3], %s11
      %s14 = sshll.u32 [#allocation2], 4
      %s15 = int_to_ptr.vmem [resolvable:$true] %s14
      %17 = dma.hbm_to_vmem [thread:$0]  %s0, 256, %s15, [#allocation3]
    $region5: #{tpu_custom_call.1} parent=1 // pred_fallthru
      _
    // Predicated region
    $region6: #{tpu_custom_call.1} parent=1 // pred_check
      _
    $region7: #{tpu_custom_call.1} parent=1 // pred_check_branch
      %19 = sbr.rel (0) target = $region9
    $region8: #{tpu_custom_call.1} parent=1 // pred_region
      %20 = dma.done [#allocation3], 256
    $region9: #{tpu_custom_call.1} parent=1 // pred_fallthru
      _
    %v21 = vld [vmem:[#allocation2] sm:$0xff]
    %v22 = vld [vmem:[#allocation2 + $0x8] sm:$0xff]
    %v23 = vmul.f32 %v21, %v21
    %v24 = vmul.f32 %v22, %v22
    %v25 = vmul.f32 %v23, %v21
    %v26 = vmul.f32 %v24, %v22
    %v27 = vmul.f32 %v25, 0.044715
    %v28 = vmul.f32 %v26, 0.044715
    %v29 = vadd.f32 %v21, %v27
    %v30 = vadd.f32 %v22, %v28
    %v31 = vmul.f32 %v29, 0.7978846
    %v32 = vmul.f32 %v30, 0.7978846
    %v33 = vmul.f32 %v21, 0.5
    %v34 = vmul.f32 %v22, 0.5
    %v35 = vtanh.pop %v31
    %v36 = vtanh.pop %v32
    %v37 = vadd.f32 %v35, 1.0
    %v38 = vadd.f32 %v36, 1.0
    %v39 = vmul.f32 %v33, %v37
    %v40 = vmul.f32 %v34, %v38
    %41 = vst [vmem:[#allocation5] sm:$0xff] %v39
    %42 = vst [vmem:[#allocation5 + $0x8] sm:$0xff] %v40
    // Predicated region
    $region10: #{tpu_custom_call.1} parent=1 // pred_check
      _
    $region11: #{tpu_custom_call.1} parent=1 // pred_check_branch
      %44 = sbr.rel (0) target = $region13
    $region12: #{tpu_custom_call.1} parent=1 // pred_region
      %s46 = ssub.s32 256, 256
      %47 = vsyncadd [#allocation4], %s46
      %s49 = sshll.u32 [#allocation5], 4
      %s50 = int_to_ptr.vmem [resolvable:$true] %s49
      %52 = dma.vmem_to_hbm [thread:$0]  %s50, 256, %s1, [#allocation4]
    $region13: #{tpu_custom_call.1} parent=1 // pred_fallthru
      _
    // Predicated region
    $region14: #{tpu_custom_call.1} parent=1 // pred_check
      _
    $region15: #{tpu_custom_call.1} parent=1 // pred_check_branch
      %54 = sbr.rel (0) target = $region17
    $region16: #{tpu_custom_call.1} parent=1 // pred_region
      %55 = dma.done [#allocation4], 256
    $region17: #{tpu_custom_call.1} parent=1 // pred_fallthru
      _
    %56 = vsyncpa [#allocation3], 1
    %57 = vsyncpa [#allocation4], 1

</llo_original>
